<compile_context>
chip_gen: v6e
topology: v6e:2x2x1
jax: 0.10.0
libtpu: 0.0.40
codegen_flags: <defaults>
</compile_context>

<pallas_src>
import jax
import jax.numpy as jnp
from jax import lax
from jax.experimental import pallas as pl
from jax.experimental.pallas import tpu as pltpu

ALPHA = 0.5
BETA = 0.5
GAMMA = 1.0
SMOOTH = 1.0

LANES = 128          # vreg lane width
GROUP_ROWS = 128     # inner-loop chunk (16 vregs per f32 temp -> no spills)
MAX_TILE_ROWS = 8192  # 8192*128*4B = 4 MiB per f32 input tile


def _round_up(x, m):
    return ((x + m - 1) // m) * m


def _sublane_multiple(dtype):
    # f32 -> 8 sublanes per vreg, bf16 -> 16, int8/bool -> 32.
    itemsize = jnp.dtype(dtype).itemsize
    return max(8, 32 // max(itemsize, 1))


def _tpu_info():
    """Best-effort (vmem_capacity_bytes, num_tensorcores); safe fallbacks."""
    cap, cores = 64 * 1024 * 1024, 1   # conservative: v7x per-core VMEM, 1 TC
    try:
        info = pltpu.get_tpu_info()
    except Exception:
        return cap, cores
    try:
        c = int(getattr(info, "vmem_capacity_bytes"))
        if 16 * 2**20 <= c <= 1024 * 2**20:
            cap = c
    except Exception:
        pass
    for attr in ("num_cores", "core_count", "num_tensorcores",
                 "tensorcore_count", "cores_per_chip"):
        try:
            v = int(getattr(info, attr))
        except Exception:
            continue
        if 1 <= v <= 8:
            cores = v
            break
    return cap, cores


def _make_kernel(tile_rows, group_rows, fuse_sum):
    trips = tile_rows // group_rows
    unroll = True if trips <= 8 else 8
    slabs = group_rows // 8
    n_acc = 2 if fuse_sum else 3

    def kernel(x_ref, t_ref, out_ref):
        i = pl.program_id(1)   # reduction axis ("arbitrary")

        @pl.when(i == 0)
        def _():
            out_ref[...] = jnp.zeros_like(out_ref)

        zero = jnp.zeros((8, LANES), jnp.float32)

        def body(g, carry):
            r = pl.multiple_of(g * group_rows, group_rows)
            x = x_ref[pl.ds(r, group_rows), :].astype(jnp.float32)
            t = t_ref[pl.ds(r, group_rows), :].astype(jnp.float32)
            # sigmoid(x) == 0.5*tanh(0.5*x) + 0.5  -> single EUP op.
            p = 0.5 * jnp.tanh(0.5 * x) + 0.5
            pt = (p * t).reshape(slabs, 8, LANES).sum(axis=0)
            if fuse_sum:                       # alpha == beta fast path
                acc_pt, acc_s = carry
                s = (p + t).reshape(slabs, 8, LANES).sum(axis=0)
                return (acc_pt + pt, acc_s + s)
            acc_pt, acc_p, acc_t = carry
            ps = p.reshape(slabs, 8, LANES).sum(axis=0)
            ts = t.reshape(slabs, 8, LANES).sum(axis=0)
            return (acc_pt + pt, acc_p + ps, acc_t + ts)

        accs = lax.fori_loop(0, trips, body, (zero,) * n_acc, unroll=unroll)

        # Fold this tile's partials into the core-resident output block.
        # The output block index ignores the reduction axis, so it stays in
        # VMEM across all steps of this core; HBM writeback happens once.
        for a in range(n_acc):
            out_ref[pl.ds(a * 8, 8), :] += accs[a]

    return kernel, n_acc


def focal_tversky_loss(inputs, targets, smooth=SMOOTH, alpha=ALPHA,
                       beta=BETA, gamma=GAMMA):
    """JAX/Pallas equivalent of FocalTverskyLoss.forward."""
    x = jnp.ravel(inputs)      # native dtype streamed from HBM (no upcast)
    t = jnp.ravel(targets)
    n = x.shape[0]
    if n == 0:
        return jnp.zeros((), jnp.float32)

    # Specialize on alpha == beta (the module default -> 2 accumulators).
    try:
        fuse_sum = bool(alpha == beta)
    except Exception:
        fuse_sum = False

    vmem_cap, num_cores = _tpu_info()

    itemsize_x = jnp.dtype(x.dtype).itemsize
    itemsize_t = jnp.dtype(t.dtype).itemsize
    bytes_per_row = LANES * (itemsize_x + itemsize_t)

    # Tile sizing: as big as ~1/4 of VMEM allows for the double-buffered
    # inputs, capped at MAX_TILE_ROWS. vmem_limit_bytes is raised to match.
    budget = vmem_cap // 4
    cap_rows = (budget // (2 * bytes_per_row)) // GROUP_ROWS * GROUP_ROWS
    max_tile_rows = max(GROUP_ROWS, min(MAX_TILE_ROWS, cap_rows))

    sub = max(_sublane_multiple(x.dtype), _sublane_multiple(t.dtype))
    rows_needed = -(-n // LANES)                    # cdiv(n, 128)
    tile_rows = _round_up(max(rows_needed, 1), sub)
    if tile_rows > GROUP_ROWS:
        tile_rows = _round_up(tile_rows, GROUP_ROWS)
    tile_rows = min(tile_rows, max_tile_rows)
    group_rows = min(GROUP_ROWS, tile_rows)

    # Split the row range across TensorCores (v7x) only if each core gets work.
    blocks_needed = -(-rows_needed // tile_rows)
    if blocks_needed < num_cores:
        num_cores = 1
    blocks_total = _round_up(blocks_needed, num_cores)
    blocks_per_core = blocks_total // num_cores
    rows_padded = blocks_total * tile_rows
    n_pad = rows_padded * LANES
    pad = n_pad - n

    # Zero-pad the ragged tail (if any). No in-kernel masking: t pads to 0 so
    # sum(p*t)/sum(t) are exact; sum(p) gains exactly 0.5 per padded logit
    # (sigmoid(0)) which is subtracted analytically below.
    if pad:
        x = jnp.pad(x, (0, pad))
        t = jnp.pad(t, (0, pad))
    x2 = x.reshape(rows_padded, LANES)
    t2 = t.reshape(rows_padded, LANES)

    kernel, n_acc = _make_kernel(tile_rows, group_rows, fuse_sum)
    acc_rows = 8 * n_acc

    in_db_bytes = 2 * tile_rows * bytes_per_row          # double-buffered inputs
    vmem_limit = min(max(in_db_bytes + (8 << 20), 16 << 20), (vmem_cap * 3) // 4)

    cost = pl.CostEstimate(
        flops=int(6 * n_pad),
        transcendentals=int(n_pad),
        bytes_accessed=int(n_pad * (itemsize_x + itemsize_t)
                           + num_cores * acc_rows * LANES * 4),
    )

    partials = pl.pallas_call(
        kernel,
        out_shape=jax.ShapeDtypeStruct((num_cores * acc_rows, LANES), jnp.float32),
        grid_spec=pltpu.PrefetchScalarGridSpec(
            num_scalar_prefetch=0,
            grid=(num_cores, blocks_per_core),
            in_specs=[
                pl.BlockSpec((tile_rows, LANES),
                             lambda c, i: (c * blocks_per_core + i, 0)),
                pl.BlockSpec((tile_rows, LANES),
                             lambda c, i: (c * blocks_per_core + i, 0)),
            ],
            out_specs=pl.BlockSpec((acc_rows, LANES), lambda c, i: (c, 0)),
        ),
        compiler_params=pltpu.CompilerParams(
            # Core-split axis is "parallel"; accumulation axis must stay
            # sequential ("arbitrary") because the output block carries.
            dimension_semantics=("parallel", "arbitrary"),
            vmem_limit_bytes=int(vmem_limit),
        ),
        cost_estimate=cost,
    )(x2, t2)

    # Tiny final reduce + Tversky/focal epilogue fused by XLA in the wrapper.
    sums = partials.reshape(num_cores, n_acc, 8, LANES).sum(axis=(0, 2, 3))
    tp = sums[0]                                   # sum(p*t)  (exact)
    pad_bias = jnp.float32(0.5 * pad)              # sigmoid(0) per padded logit
    if fuse_sum:
        p_plus_t = sums[1] - pad_bias              # sum(p) + sum(t)
        denom = tp + alpha * (p_plus_t - 2.0 * tp) + smooth
    else:
        sum_p = sums[1] - pad_bias
        sum_t = sums[2]
        denom = tp + alpha * (sum_p - tp) + beta * (sum_t - tp) + smooth
    tversky = (tp + smooth) / denom
    focal = 1.0 - tversky
    if isinstance(gamma, (int, float)) and gamma == 1:
        return focal                               # gamma=1 -> pow is a no-op
    return focal ** gamma


def _reference(inputs, targets):
    p = jax.nn.sigmoid(inputs.astype(jnp.float32)).ravel()
    t = targets.astype(jnp.float32).ravel()
    tp = jnp.sum(p * t)
    fp = jnp.sum((1.0 - t) * p)
    fn = jnp.sum(t * (1.0 - p))
    tversky = (tp + SMOOTH) / (tp + ALPHA * fp + BETA * fn + SMOOTH)
    return (1.0 - tversky) ** GAMMA


if __name__ == "__main__":
    key = jax.random.PRNGKey(0)
    k1, k2 = jax.random.split(key)
    # NCHW logits and binary targets (segmentation-loss usage).
    inputs = jax.random.normal(k1, (2, 4, 16, 16), dtype=jnp.float32)
    targets = (jax.random.uniform(k2, (2, 4, 16, 16)) > 0.5).astype(jnp.float32)

    loss = focal_tversky_loss(inputs, targets)
    jax.block_until_ready(loss)

    ref = _reference(inputs, targets)
    assert jnp.allclose(loss, ref, atol=1e-5, rtol=1e-5), (loss, ref)
    print("KERNEL_OK")
</pallas_src>

<mosaic_0001>
module attributes {stable_mosaic.version = 11 : i64} {
  func.func @kernel(%arg0: i32, %arg1: i32, %arg2: memref<16x128xf32, #tpu.memory_space<vmem>>, %arg3: memref<16x128xf32, #tpu.memory_space<vmem>>, %arg4: memref<16x128xf32, #tpu.memory_space<vmem>>) attributes {dimension_semantics = [#tpu.dimension_semantics<parallel>, #tpu.dimension_semantics<arbitrary>], iteration_bounds = array<i64: 1, 1>, scalar_prefetch = 0 : i64, scratch_operands = 0 : i64, tpu.core_type = #tpu.core_type<tc>, window_params = [{transform_indices = @transform_0, window_bounds = array<i64: 16, 128>}, {transform_indices = @transform_1, window_bounds = array<i64: 16, 128>}, {transform_indices = @transform_2, window_bounds = array<i64: 16, 128>}]} {
    %c0_i32 = arith.constant 0 : i32
    %0 = arith.cmpi eq, %arg1, %c0_i32 : i32
    %1 = arith.extui %0 : i1 to i32
    %c0_i32_0 = arith.constant 0 : i32
    %2 = arith.cmpi ne, %1, %c0_i32_0 : i32
    scf.if %2 {
      %cst_15 = arith.constant 0.000000e+00 : f32
      %31 = vector.broadcast %cst_15 : f32 to vector<16x128xf32>
      %c0_16 = arith.constant 0 : index
      %c0_17 = arith.constant 0 : index
      %32 = vector.load %arg4[%c0_16, %c0_17] : memref<16x128xf32, #tpu.memory_space<vmem>>, vector<16x128xf32>
      tpu.vector_store %arg4[%c0_16, %c0_17], %31 {strides = array<i32>} : memref<16x128xf32, #tpu.memory_space<vmem>>, vector<16x128xf32>,
    } else {
    }
    %cst = arith.constant 0.000000e+00 : f32
    %3 = vector.broadcast %cst : f32 to vector<8x128xf32>
    %c0_i32_1 = arith.constant 0 : i32
    %c16_i32 = arith.constant 16 : i32
    %4 = arith.muli %c0_i32_1, %c16_i32 : i32
    %5 = tpu.assume_multiple %4, 16 : i32
    %6 = arith.index_cast %5 : i32 to index
    %c0 = arith.constant 0 : index
    %7 = vector.load %arg2[%6, %c0] : memref<16x128xf32, #tpu.memory_space<vmem>>, vector<16x128xf32>
    %8 = arith.index_cast %5 : i32 to index
    %c0_2 = arith.constant 0 : index
    %9 = vector.load %arg3[%8, %c0_2] : memref<16x128xf32, #tpu.memory_space<vmem>>, vector<16x128xf32>
    %cst_3 = arith.constant 5.000000e-01 : f32
    %10 = vector.broadcast %cst_3 : f32 to vector<16x128xf32>
    %11 = arith.mulf %10, %7 : vector<16x128xf32>
    %12 = math.tanh %11 : vector<16x128xf32>
    %cst_4 = arith.constant 5.000000e-01 : f32
    %13 = vector.broadcast %cst_4 : f32 to vector<16x128xf32>
    %14 = arith.mulf %13, %12 : vector<16x128xf32>
    %cst_5 = arith.constant 5.000000e-01 : f32
    %15 = vector.broadcast %cst_5 : f32 to vector<16x128xf32>
    %16 = arith.addf %14, %15 : vector<16x128xf32>
    %17 = arith.mulf %16, %9 : vector<16x128xf32>
    %18 = vector.shape_cast %17 : vector<16x128xf32> to vector<2x8x128xf32>
    %cst_6 = arith.constant dense<0.000000e+00> : vector<8x128xf32>
    %19 = vector.multi_reduction <add>, %18, %cst_6 [0] : vector<2x8x128xf32> to vector<8x128xf32>
    %20 = arith.addf %16, %9 : vector<16x128xf32>
    %21 = vector.shape_cast %20 : vector<16x128xf32> to vector<2x8x128xf32>
    %cst_7 = arith.constant dense<0.000000e+00> : vector<8x128xf32>
    %22 = vector.multi_reduction <add>, %21, %cst_7 [0] : vector<2x8x128xf32> to vector<8x128xf32>
    %23 = arith.addf %3, %19 : vector<8x128xf32>
    %24 = arith.addf %3, %22 : vector<8x128xf32>
    %c1_i32 = arith.constant 1 : i32
    %c0_8 = arith.constant 0 : index
    %c0_9 = arith.constant 0 : index
    %25 = vector.load %arg4[%c0_8, %c0_9] : memref<16x128xf32, #tpu.memory_space<vmem>>, vector<8x128xf32>
    %26 = arith.addf %25, %23 : vector<8x128xf32>
    %c0_10 = arith.constant 0 : index
    %c0_11 = arith.constant 0 : index
    %27 = vector.load %arg4[%c0_10, %c0_11] : memref<16x128xf32, #tpu.memory_space<vmem>>, vector<8x128xf32>
    tpu.vector_store %arg4[%c0_10, %c0_11], %26 {strides = array<i32>} : memref<16x128xf32, #tpu.memory_space<vmem>>, vector<8x128xf32>,
    %c8 = arith.constant 8 : index
    %c0_12 = arith.constant 0 : index
    %28 = vector.load %arg4[%c8, %c0_12] : memref<16x128xf32, #tpu.memory_space<vmem>>, vector<8x128xf32>
    %29 = arith.addf %28, %24 : vector<8x128xf32>
    %c8_13 = arith.constant 8 : index
    %c0_14 = arith.constant 0 : index
    %30 = vector.load %arg4[%c8_13, %c0_14] : memref<16x128xf32, #tpu.memory_space<vmem>>, vector<8x128xf32>
    tpu.vector_store %arg4[%c8_13, %c0_14], %29 {strides = array<i32>} : memref<16x128xf32, #tpu.memory_space<vmem>>, vector<8x128xf32>,
    return
  }
  func.func @transform_0(%arg0: i32, %arg1: i32) -> (i32, i32) {
    %c1_i32 = arith.constant 1 : i32
    %0 = arith.muli %arg0, %c1_i32 : i32
    %1 = arith.addi %0, %arg1 : i32
    %c0_i32 = arith.constant 0 : i32
    %c0_i32_0 = arith.constant 0 : i32
    return %1, %c0_i32 : i32, i32
  }
  func.func @transform_1(%arg0: i32, %arg1: i32) -> (i32, i32) {
    %c1_i32 = arith.constant 1 : i32
    %0 = arith.muli %arg0, %c1_i32 : i32
    %1 = arith.addi %0, %arg1 : i32
    %c0_i32 = arith.constant 0 : i32
    %c0_i32_0 = arith.constant 0 : i32
    return %1, %c0_i32 : i32, i32
  }
  func.func @transform_2(%arg0: i32, %arg1: i32) -> (i32, i32) {
    %c0_i32 = arith.constant 0 : i32
    %c0_i32_0 = arith.constant 0 : i32
    return %arg0, %c0_i32 : i32, i32
  }
}

</mosaic_0001>

<llo_original>
// kernel: tpu_custom_call.1
$region0: #{tpu_custom_call.1}
  #allocation0 [shape = 'u32[]', space=smem, size = 0x4, offset = 0x4, fixed_abs, tag = 'smem constant byte address 0x4 - core index']
  #allocation1 [shape = 'u32[144,128]{1,0:T(1,128)}', space=vmem, size = 0x12000, scoped, tag = 'internal scratch']
  %s0 = inlined_call_operand.hbm [shape: f32[16,128], index: 0, kind: input, shape index: {}]
  %s1 = inlined_call_operand.hbm [shape: f32[16,128], index: 1, kind: input, shape index: {}]
  %s2 = inlined_call_operand.hbm [shape: f32[16,128], index: 2, kind: output, shape index: {}]
  %s3 = sld [smem:[#allocation0]]
  $region30: #{tpu_custom_call.1} parent=0
    _
  %s5 = ssub.s32 1, %s3
  %s6 = scalar_select 0, %s5, %s3
  $region1: #{tpu_custom_call.1} parent=0
    #allocation2 [shape = 'u8[8192]{0}', space=vmem, size = 0x2000, scoped, tag = 'input window, operand 0, single buffered']
    #allocation3 [shape = 's32[1]{0}', space=sflag, size = 0x4, scoped, tag = 'scoped memory for tpu_custom_call.1']
    #allocation4 [shape = 's32[1]{0}', space=sflag, size = 0x4, scoped, tag = 'scoped memory for tpu_custom_call.1']
    #allocation5 [shape = 'u8[8192]{0}', space=vmem, size = 0x2000, scoped, tag = 'input window, operand 1, single buffered']
    #allocation6 [shape = 's32[1]{0}', space=sflag, size = 0x4, scoped, tag = 'scoped memory for tpu_custom_call.1']
    #allocation7 [shape = 'u8[8192]{0}', space=vmem, size = 0x2000, scoped, tag = 'output window, operand 0, single buffered']
    %7 = vsyncpa [#allocation3], 0
    %8 = vsyncpa [#allocation6], 0
    %9 = vsyncpa [#allocation4], 0
    // Predicated region
    $region2: #{tpu_custom_call.1} parent=1 // pred_check
      _
    $region3: #{tpu_custom_call.1} parent=1 // pred_check_branch
      %11 = sbr.rel (0) target = $region5
    $region4: #{tpu_custom_call.1} parent=1 // pred_region
      %s12 = sadd.s32 0, 0
      %s13 = smul.u32 2, %s12
      %s15 = ssub.s32 256, 256
      %16 = vsyncadd [#allocation3], %s15
      %s17 = smul.addr %s13, 128
      %s18 = scalar_lea.hbm %s0, %s17
      %s19 = sshll.u32 [#allocation2], 4
      %s20 = int_to_ptr.vmem [resolvable:$true] %s19
      %25 = dma.hbm_to_vmem [thread:$0]  %s18, 256, %s20, [#allocation3], 128, 128, 8
    $region5: #{tpu_custom_call.1} parent=1 // pred_fallthru
      _
    // Predicated region
    $region6: #{tpu_custom_call.1} parent=1 // pred_check
      _
    $region7: #{tpu_custom_call.1} parent=1 // pred_check_branch
      %27 = sbr.rel (0) target = $region9
    $region8: #{tpu_custom_call.1} parent=1 // pred_region
      %s28 = sadd.s32 0, 0
      %s29 = smul.u32 2, %s28
      %s31 = ssub.s32 256, 256
      %32 = vsyncadd [#allocation6], %s31
      %s33 = smul.addr %s29, 128
      %s34 = scalar_lea.hbm %s1, %s33
      %s35 = sshll.u32 [#allocation5], 4
      %s36 = int_to_ptr.vmem [resolvable:$true] %s35
      %41 = dma.hbm_to_vmem [thread:$0]  %s34, 256, %s36, [#allocation6], 128, 128, 8
    $region9: #{tpu_custom_call.1} parent=1 // pred_fallthru
      _
    // Predicated region
    $region10: #{tpu_custom_call.1} parent=1 // pred_check
      _
    $region11: #{tpu_custom_call.1} parent=1 // pred_check_branch
      %43 = sbr.rel (0) target = $region13
    $region12: #{tpu_custom_call.1} parent=1 // pred_region
      %44 = dma.done [#allocation3], 256
    $region13: #{tpu_custom_call.1} parent=1 // pred_fallthru
      _
    // Predicated region
    $region14: #{tpu_custom_call.1} parent=1 // pred_check
      _
    $region15: #{tpu_custom_call.1} parent=1 // pred_check_branch
      %46 = sbr.rel (0) target = $region17
    $region16: #{tpu_custom_call.1} parent=1 // pred_region
      %47 = dma.done [#allocation6], 256
    $region17: #{tpu_custom_call.1} parent=1 // pred_fallthru
      _
    %s48 = sadd.s32 0, 0
    %s49 = smul.u32 2, %s48
    %s50 = sadd.s32 0, 0
    %s51 = smul.u32 2, %s50
    %p52 = scmp.eq.s32.totalorder 0, 0
    // Predicated region
    $region18: #{tpu_custom_call.1} parent=1 // pred_check
      %p53 = pneg %p52
    $region19: #{tpu_custom_call.1} parent=1 // pred_check_branch
      %55 = sbr.rel (%p53) target = $region21
    $region20: #{tpu_custom_call.1} parent=1 // pred_region
      %56 = vst [vmem:[#allocation7] sm:$0xff] 0.0
      %57 = vst [vmem:[#allocation7 + $0x8] sm:$0xff] 0.0
    $region21: #{tpu_custom_call.1} parent=1 // pred_fallthru
      _
    %v58 = vld [vmem:[#allocation2] sm:$0xff]
    %v59 = vld [vmem:[#allocation2 + $0x8] sm:$0xff]
    %v60 = vld [vmem:[#allocation5] sm:$0xff]
    %v61 = vld [vmem:[#allocation5 + $0x8] sm:$0xff]
    %v62 = vmul.f32 %v58, 0.5
    %v63 = vmul.f32 %v59, 0.5
    %v64 = vtanh.pop %v62
    %v65 = vtanh.pop %v63
    %v66 = vmul.f32 %v64, 0.5
    %v67 = vmul.f32 %v65, 0.5
    %v68 = vadd.f32 %v66, 0.5
    %v69 = vadd.f32 %v67, 0.5
    %v70 = vmul.f32 %v68, %v60
    %v71 = vmul.f32 %v69, %v61
    %v72 = vadd.f32 %v70, %v71
    %v73 = vadd.f32 %v68, %v60
    %v74 = vadd.f32 %v69, %v61
    %v75 = vadd.f32 %v73, %v74
    %v76 = vadd.f32 %v72, 0.0
    %v77 = vadd.f32 %v75, 0.0
    %v78 = vld [vmem:[#allocation7] sm:$0xff]
    %v79 = vadd.f32 %v78, %v76
    %80 = vst [vmem:[#allocation7] sm:$0xff] %v79
    %v81 = vld [vmem:[#allocation7 + $0x8] sm:$0xff]
    %v82 = vadd.f32 %v81, %v77
    %83 = vst [vmem:[#allocation7 + $0x8] sm:$0xff] %v82
    // Predicated region
    $region22: #{tpu_custom_call.1} parent=1 // pred_check
      _
    $region23: #{tpu_custom_call.1} parent=1 // pred_check_branch
      %85 = sbr.rel (0) target = $region25
    $region24: #{tpu_custom_call.1} parent=1 // pred_region
      %s87 = ssub.s32 256, 256
      %88 = vsyncadd [#allocation4], %s87
      %s89 = sshll.u32 [#allocation7], 4
      %s90 = int_to_ptr.vmem [resolvable:$true] %s89
      %95 = dma.vmem_to_hbm [thread:$0]  %s90, 256, %s2, [#allocation4], 128, 128, 8
    $region25: #{tpu_custom_call.1} parent=1 // pred_fallthru
      _
    // Predicated region
    $region26: #{tpu_custom_call.1} parent=1 // pred_check
      _
    $region27: #{tpu_custom_call.1} parent=1 // pred_check_branch
      %97 = sbr.rel (0) target = $region29
    $region28: #{tpu_custom_call.1} parent=1 // pred_region
      %98 = dma.done [#allocation4], 256
    $region29: #{tpu_custom_call.1} parent=1 // pred_fallthru
      _
    %99 = vsyncpa [#allocation3], 1
    %100 = vsyncpa [#allocation6], 1
    %101 = vsyncpa [#allocation4], 1

</llo_original>
